<compile_context>
chip_gen: v7x
topology: tpu7x:2x2x1
jax: 0.10.0
libtpu: 0.0.40
codegen_flags: <defaults>
</compile_context>

<pallas_src>
import jax
import jax.numpy as jnp
from jax import lax
from jax.experimental import pallas as pl
from jax.experimental.pallas import tpu as pltpu


def _round_up(n, m):
    return ((n + m - 1) // m) * m


def _linear_kernel(x_ref, w_ref, b_ref, o_ref):
    # x_ref: (TILE_B, D), w_ref: (O_pad, D), b_ref: (1, O_pad), o_ref: (TILE_B, O_pad)
    # Contract last dim of x with last dim of w  ==  x @ w.T  (no host transpose needed).
    acc = lax.dot_general(
        x_ref[...],
        w_ref[...],
        dimension_numbers=(((1,), (1,)), ((), ())),
        preferred_element_type=jnp.float32,
    )
    o_ref[...] = (acc + b_ref[...]).astype(o_ref.dtype)


def logistic_regression_forward(x, weight, bias, *, tile_b=1024):
    """Equivalent to PyTorch nn.Linear: out = x @ weight.T + bias.

    x:      (B, input_dim)            float32
    weight: (output_dim, input_dim)   float32  (PyTorch convention, NOT transposed)
    bias:   (output_dim,)             float32
    returns (B, output_dim) float32
    """
    B, D = x.shape
    O = weight.shape[0]
    O_pad = _round_up(max(O, 128), 128)  # lane-dense output width

    # Zero-pad params to the lane-dense width (tiny: (128, D) + (1, 128)).
    w_p = jnp.zeros((O_pad, D), weight.dtype).at[:O, :].set(weight)
    b_p = jnp.zeros((1, O_pad), bias.dtype).at[0, :O].set(bias)

    # Batch tile: multiple of 8 (sublane), capped at tile_b and at the (rounded-up) batch.
    # 2 buffers x (1024xD + 1024xO_pad) f32 + resident O_pad x D weight  ~= 7.5 MiB for
    # D=784, far under the 32 MiB default scoped VMEM on every generation (64 MiB phys v7x).
    tb = _round_up(min(tile_b, _round_up(B, 8)), 8)
    grid = (pl.cdiv(B, tb),)

    itemsize = jnp.dtype(x.dtype).itemsize
    cost = pl.CostEstimate(
        flops=2 * B * D * O_pad,
        transcendentals=0,
        bytes_accessed=(B * D + O_pad * D + O_pad + B * O_pad) * itemsize,
    )

    out = pl.pallas_call(
        _linear_kernel,
        out_shape=jax.ShapeDtypeStruct((B, O_pad), x.dtype),
        grid_spec=pl.GridSpec(
            grid=grid,
            in_specs=[
                pl.BlockSpec((tb, D), lambda i: (i, 0)),     # x: streamed per batch tile
                pl.BlockSpec((O_pad, D), lambda i: (0, 0)),  # weight: resident across grid
                pl.BlockSpec((1, O_pad), lambda i: (0, 0)),  # bias: resident across grid
            ],
            out_specs=pl.BlockSpec((tb, O_pad), lambda i: (i, 0)),
        ),
        compiler_params=pltpu.CompilerParams(
            dimension_semantics=("parallel",),               # batch axis -> 2 TCs on v7x
        ),
        cost_estimate=cost,
    )(x, w_p, b_p)

    return out[:, :O]


if __name__ == "__main__":
    # MNIST-style: input_dim = 28*28 = 784, output_dim = 10 classes, small batch.
    batch = 8
    input_dim = 784
    output_dim = 10

    key = jax.random.PRNGKey(0)
    kx, kw, kb = jax.random.split(key, 3)

    x = jax.random.normal(kx, (batch, input_dim), dtype=jnp.float32)
    # Deterministic param init mimicking nn.Linear's U(-1/sqrt(fan_in), 1/sqrt(fan_in))
    bound = 1.0 / jnp.sqrt(jnp.float32(input_dim))
    weight = jax.random.uniform(
        kw, (output_dim, input_dim), minval=-bound, maxval=bound, dtype=jnp.float32
    )
    bias = jax.random.uniform(
        kb, (output_dim,), minval=-bound, maxval=bound, dtype=jnp.float32
    )

    out = logistic_regression_forward(x, weight, bias)
    jax.block_until_ready(out)

    # Correctness check against plain JAX reference
    ref = x @ weight.T + bias
    assert out.shape == (batch, output_dim)
    assert jnp.allclose(out, ref, atol=1e-5, rtol=1e-5)

    print("KERNEL_OK")
</pallas_src>

<mosaic_0001>
module attributes {stable_mosaic.version = 11 : i64} {
  func.func @_linear_kernel(%arg0: i32, %arg1: memref<8x784xf32, #tpu.memory_space<vmem>>, %arg2: memref<128x784xf32, #tpu.memory_space<vmem>>, %arg3: memref<1x128xf32, #tpu.memory_space<vmem>>, %arg4: memref<8x128xf32, #tpu.memory_space<vmem>>) attributes {dimension_semantics = [#tpu.dimension_semantics<parallel>], iteration_bounds = array<i64: 1>, scalar_prefetch = 0 : i64, scratch_operands = 0 : i64, tpu.core_type = #tpu.core_type<tc>, window_params = [{transform_indices = @transform_0, window_bounds = array<i64: 8, 784>}, {pipeline_mode = #tpu.pipeline_mode<synchronous>, transform_indices = @transform_1, window_bounds = array<i64: 128, 784>}, {pipeline_mode = #tpu.pipeline_mode<synchronous>, transform_indices = @transform_2, window_bounds = array<i64: 1, 128>}, {transform_indices = @transform_3, window_bounds = array<i64: 8, 128>}]} {
    %c0 = arith.constant 0 : index
    %c0_0 = arith.constant 0 : index
    %0 = vector.load %arg1[%c0, %c0_0] : memref<8x784xf32, #tpu.memory_space<vmem>>, vector<8x784xf32>
    %c0_1 = arith.constant 0 : index
    %c0_2 = arith.constant 0 : index
    %1 = vector.load %arg2[%c0_1, %c0_2] : memref<128x784xf32, #tpu.memory_space<vmem>>, vector<128x784xf32>
    %cst = arith.constant dense<0.000000e+00> : vector<8x128xf32>
    %2 = tpu.matmul %0, %1, %cst {dimension_numbers = #tpu.dot_dimension_numbers<[1], [1], [0], [0], [0, 0, 1, 0], [], []>} : vector<8x784xf32>, vector<128x784xf32>, vector<8x128xf32> -> vector<8x128xf32>
    %c0_3 = arith.constant 0 : index
    %c0_4 = arith.constant 0 : index
    %3 = vector.load %arg3[%c0_3, %c0_4] : memref<1x128xf32, #tpu.memory_space<vmem>>, vector<1x128xf32>
    %4 = vector.broadcast %3 : vector<1x128xf32> to vector<8x128xf32>
    %5 = arith.addf %2, %4 : vector<8x128xf32>
    %c0_5 = arith.constant 0 : index
    %c0_6 = arith.constant 0 : index
    %6 = vector.load %arg4[%c0_5, %c0_6] : memref<8x128xf32, #tpu.memory_space<vmem>>, vector<8x128xf32>
    tpu.vector_store %arg4[%c0_5, %c0_6], %5 {strides = array<i32>} : memref<8x128xf32, #tpu.memory_space<vmem>>, vector<8x128xf32>,
    return
  }
  func.func @transform_0(%arg0: i32) -> (i32, i32) {
    %c0_i32 = arith.constant 0 : i32
    %c0_i32_0 = arith.constant 0 : i32
    return %arg0, %c0_i32 : i32, i32
  }
  func.func @transform_1(%arg0: i32) -> (i32, i32) {
    %c0_i32 = arith.constant 0 : i32
    %c0_i32_0 = arith.constant 0 : i32
    %c0_i32_1 = arith.constant 0 : i32
    return %c0_i32, %c0_i32_0 : i32, i32
  }
  func.func @transform_2(%arg0: i32) -> (i32, i32) {
    %c0_i32 = arith.constant 0 : i32
    %c0_i32_0 = arith.constant 0 : i32
    %c0_i32_1 = arith.constant 0 : i32
    return %c0_i32, %c0_i32_0 : i32, i32
  }
  func.func @transform_3(%arg0: i32) -> (i32, i32) {
    %c0_i32 = arith.constant 0 : i32
    %c0_i32_0 = arith.constant 0 : i32
    return %arg0, %c0_i32 : i32, i32
  }
}

</mosaic_0001>

<llo_original>
// kernel: tpu_custom_call.1
$region0: #{tpu_custom_call.1}
  #allocation0 [shape = 'u32[]', space=smem, size = 0x4, offset = 0x4, fixed_abs, tag = 'smem constant byte address 0x4 - core index']
  #allocation1 [shape = 'u32[144,128]{1,0:T(1,128)}', space=vmem, size = 0x12000, scoped, tag = 'internal scratch']
  %s0 = inlined_call_operand.vmem [shape: f32[8,784], index: 0, kind: input, shape index: {}]
  %s1 = inlined_call_operand.vmem [shape: f32[128,784], index: 1, kind: input, shape index: {}]
  %s2 = inlined_call_operand.vmem [shape: f32[1,128], index: 2, kind: input, shape index: {}]
  %s3 = inlined_call_operand.hbm [shape: f32[8,128], index: 3, kind: output, shape index: {}]
  %s4 = sld [smem:[#allocation0]]
  $region22: #{tpu_custom_call.1} parent=0
    _
  %s6 = ssub.s32 1, %s4
  %s7 = scalar_select 0, %s6, %s4
  $region1: #{tpu_custom_call.1} parent=0
    #allocation2 [shape = 'u8[4096]{0}', space=vmem, size = 0x1000, scoped, tag = 'output window, operand 0, single buffered']
    #allocation3 [shape = 's32[1]{0}', space=sflag, size = 0x4, scoped, tag = 'scoped memory for tpu_custom_call.1']
    %8 = vsyncpa [#allocation3], 0
    // Predicated region
    $region2: #{tpu_custom_call.1} parent=1 // pred_check
      _
    $region3: #{tpu_custom_call.1} parent=1 // pred_check_branch
      %10 = sbr.rel (0) target = $region5
    $region4: #{tpu_custom_call.1} parent=1 // pred_region
      _
    $region5: #{tpu_custom_call.1} parent=1 // pred_fallthru
      _
    // Predicated region
    $region6: #{tpu_custom_call.1} parent=1 // pred_check
      _
    $region7: #{tpu_custom_call.1} parent=1 // pred_check_branch
      %12 = sbr.rel (0) target = $region9
    $region8: #{tpu_custom_call.1} parent=1 // pred_region
      _
    $region9: #{tpu_custom_call.1} parent=1 // pred_fallthru
      _
    // Predicated region
    $region10: #{tpu_custom_call.1} parent=1 // pred_check
      _
    $region11: #{tpu_custom_call.1} parent=1 // pred_check_branch
      %14 = sbr.rel (0) target = $region13
    $region12: #{tpu_custom_call.1} parent=1 // pred_region
      _
    $region13: #{tpu_custom_call.1} parent=1 // pred_fallthru
      _
    %v15 = vld [vmem:[%s0] sm:$0xff]
    %v16 = vld [vmem:[%s0 + $0x8] sm:$0xff]
    %v17 = vld [vmem:[%s0 + $0x10] sm:$0xff]
    %v18 = vld [vmem:[%s0 + $0x18] sm:$0xff]
    %v19 = vld [vmem:[%s0 + $0x20] sm:$0xff]
    %v20 = vld [vmem:[%s0 + $0x28] sm:$0xff]
    %v21 = vld [vmem:[%s0 + $0x30] sm:$0xff]
    %v22 = vld [vmem:[%s1] sm:$0xff]
    %v23 = vld [vmem:[%s1 + $0x8] sm:$0xff]
    %v24 = vld [vmem:[%s1 + $0x10] sm:$0xff]
    %v25 = vld [vmem:[%s1 + $0x18] sm:$0xff]
    %v26 = vld [vmem:[%s1 + $0x20] sm:$0xff]
    %v27 = vld [vmem:[%s1 + $0x28] sm:$0xff]
    %v28 = vld [vmem:[%s1 + $0x30] sm:$0xff]
    %v29 = vld [vmem:[%s1 + $0x38] sm:$0xff]
    %v30 = vld [vmem:[%s1 + $0x40] sm:$0xff]
    %v31 = vld [vmem:[%s1 + $0x48] sm:$0xff]
    %v32 = vld [vmem:[%s1 + $0x50] sm:$0xff]
    %v33 = vld [vmem:[%s1 + $0x58] sm:$0xff]
    %v34 = vld [vmem:[%s1 + $0x60] sm:$0xff]
    %v35 = vld [vmem:[%s1 + $0x68] sm:$0xff]
    %v36 = vld [vmem:[%s1 + $0x70] sm:$0xff]
    %v37 = vld [vmem:[%s1 + $0x78] sm:$0xff]
    %v38 = vld [vmem:[%s1 + $0x80] sm:$0xff]
    %v39 = vld [vmem:[%s1 + $0x88] sm:$0xff]
    %v40 = vld [vmem:[%s1 + $0x90] sm:$0xff]
    %v41 = vld [vmem:[%s1 + $0x98] sm:$0xff]
    %v42 = vld [vmem:[%s1 + $0xa0] sm:$0xff]
    %v43 = vld [vmem:[%s1 + $0xa8] sm:$0xff]
    %v44 = vld [vmem:[%s1 + $0xb0] sm:$0xff]
    %v45 = vld [vmem:[%s1 + $0xb8] sm:$0xff]
    %v46 = vld [vmem:[%s1 + $0xc0] sm:$0xff]
    %v47 = vld [vmem:[%s1 + $0xc8] sm:$0xff]
    %v48 = vld [vmem:[%s1 + $0xd0] sm:$0xff]
    %v49 = vld [vmem:[%s1 + $0xd8] sm:$0xff]
    %v50 = vld [vmem:[%s1 + $0xe0] sm:$0xff]
    %v51 = vld [vmem:[%s1 + $0xe8] sm:$0xff]
    %v52 = vld [vmem:[%s1 + $0xf0] sm:$0xff]
    %v53 = vld [vmem:[%s1 + $0xf8] sm:$0xff]
    %v54 = vld [vmem:[%s1 + $0x100] sm:$0xff]
    %v55 = vld [vmem:[%s1 + $0x108] sm:$0xff]
    %v56 = vld [vmem:[%s1 + $0x110] sm:$0xff]
    %v57 = vld [vmem:[%s1 + $0x118] sm:$0xff]
    %v58 = vld [vmem:[%s1 + $0x120] sm:$0xff]
    %v59 = vld [vmem:[%s1 + $0x128] sm:$0xff]
    %v60 = vld [vmem:[%s1 + $0x130] sm:$0xff]
    %v61 = vld [vmem:[%s1 + $0x138] sm:$0xff]
    %v62 = vld [vmem:[%s1 + $0x140] sm:$0xff]
    %v63 = vld [vmem:[%s1 + $0x148] sm:$0xff]
    %v64 = vld [vmem:[%s1 + $0x150] sm:$0xff]
    %v65 = vld [vmem:[%s1 + $0x158] sm:$0xff]
    %v66 = vld [vmem:[%s1 + $0x160] sm:$0xff]
    %v67 = vld [vmem:[%s1 + $0x168] sm:$0xff]
    %v68 = vld [vmem:[%s1 + $0x170] sm:$0xff]
    %v69 = vld [vmem:[%s1 + $0x178] sm:$0xff]
    %v70 = vld [vmem:[%s1 + $0x180] sm:$0xff]
    %v71 = vld [vmem:[%s1 + $0x188] sm:$0xff]
    %v72 = vld [vmem:[%s1 + $0x190] sm:$0xff]
    %v73 = vld [vmem:[%s1 + $0x198] sm:$0xff]
    %v74 = vld [vmem:[%s1 + $0x1a0] sm:$0xff]
    %v75 = vld [vmem:[%s1 + $0x1a8] sm:$0xff]
    %v76 = vld [vmem:[%s1 + $0x1b0] sm:$0xff]
    %v77 = vld [vmem:[%s1 + $0x1b8] sm:$0xff]
    %v78 = vld [vmem:[%s1 + $0x1c0] sm:$0xff]
    %v79 = vld [vmem:[%s1 + $0x1c8] sm:$0xff]
    %v80 = vld [vmem:[%s1 + $0x1d0] sm:$0xff]
    %v81 = vld [vmem:[%s1 + $0x1d8] sm:$0xff]
    %v82 = vld [vmem:[%s1 + $0x1e0] sm:$0xff]
    %v83 = vld [vmem:[%s1 + $0x1e8] sm:$0xff]
    %v84 = vld [vmem:[%s1 + $0x1f0] sm:$0xff]
    %v85 = vld [vmem:[%s1 + $0x1f8] sm:$0xff]
    %v86 = vld [vmem:[%s1 + $0x200] sm:$0xff]
    %v87 = vld [vmem:[%s1 + $0x208] sm:$0xff]
    %v88 = vld [vmem:[%s1 + $0x210] sm:$0xff]
    %v89 = vld [vmem:[%s1 + $0x218] sm:$0xff]
    %v90 = vld [vmem:[%s1 + $0x220] sm:$0xff]
    %v91 = vld [vmem:[%s1 + $0x228] sm:$0xff]
    %v92 = vld [vmem:[%s1 + $0x230] sm:$0xff]
    %v93 = vld [vmem:[%s1 + $0x238] sm:$0xff]
    %v94 = vld [vmem:[%s1 + $0x240] sm:$0xff]
    %v95 = vld [vmem:[%s1 + $0x248] sm:$0xff]
    %v96 = vld [vmem:[%s1 + $0x250] sm:$0xff]
    %v97 = vld [vmem:[%s1 + $0x258] sm:$0xff]
    %v98 = vld [vmem:[%s1 + $0x260] sm:$0xff]
    %v99 = vld [vmem:[%s1 + $0x268] sm:$0xff]
    %v100 = vld [vmem:[%s1 + $0x270] sm:$0xff]
    %v101 = vld [vmem:[%s1 + $0x278] sm:$0xff]
    %v102 = vld [vmem:[%s1 + $0x280] sm:$0xff]
    %v103 = vld [vmem:[%s1 + $0x288] sm:$0xff]
    %v104 = vld [vmem:[%s1 + $0x290] sm:$0xff]
    %v105 = vld [vmem:[%s1 + $0x298] sm:$0xff]
    %v106 = vld [vmem:[%s1 + $0x2a0] sm:$0xff]
    %v107 = vld [vmem:[%s1 + $0x2a8] sm:$0xff]
    %v108 = vld [vmem:[%s1 + $0x2b0] sm:$0xff]
    %v109 = vld [vmem:[%s1 + $0x2b8] sm:$0xff]
    %v110 = vld [vmem:[%s1 + $0x2c0] sm:$0xff]
    %v111 = vld [vmem:[%s1 + $0x2c8] sm:$0xff]
    %v112 = vld [vmem:[%s1 + $0x2d0] sm:$0xff]
    %v113 = vld [vmem:[%s1 + $0x2d8] sm:$0xff]
    %v114 = vld [vmem:[%s1 + $0x2e0] sm:$0xff]
    %v115 = vld [vmem:[%s1 + $0x2e8] sm:$0xff]
    %v116 = vld [vmem:[%s1 + $0x2f0] sm:$0xff]
    %v117 = vld [vmem:[%s1 + $0x2f8] sm:$0xff]
    %v118 = vld [vmem:[%s1 + $0x300] sm:$0xff]
    %v119 = vld [vmem:[%s1 + $0x308] sm:$0xff]
    %v120 = vld [vmem:[%s1 + $0x310] sm:$0xff]
    %v121 = vld [vmem:[%s1 + $0x318] sm:$0xff]
    %v122 = vld [vmem:[%s1 + $0x320] sm:$0xff]
    %v123 = vld [vmem:[%s1 + $0x328] sm:$0xff]
    %v124 = vld [vmem:[%s1 + $0x330] sm:$0xff]
    %v125 = vld [vmem:[%s1 + $0x338] sm:$0xff]
    %v126 = vld [vmem:[%s1 + $0x340] sm:$0xff]
    %v127 = vld [vmem:[%s1 + $0x348] sm:$0xff]
    %v128 = vld [vmem:[%s1 + $0x350] sm:$0xff]
    %v129 = vld [vmem:[%s1 + $0x358] sm:$0xff]
    %v130 = vld [vmem:[%s1 + $0x360] sm:$0xff]
    %v131 = vld [vmem:[%s1 + $0x368] sm:$0xff]
    %v132 = vld [vmem:[%s1 + $0x370] sm:$0xff]
    %v133 = vld [vmem:[%s1 + $0x378] sm:$0xff]
    %v134 = vld [vmem:[%s2] sm:$0x1]
    %v136 = vlaneseq
    %v137 = vshrl.u32 %v136, 7
    %v138 = vsub.s32 0, %v137
    %v139 = vrot.slane %v134, %v138
    %vm141 = vcmask 130048
    %v143 = vsel %vm141, %v21, 0
    %v146 = vsel %vm141, %v28, 0
    %v149 = vsel %vm141, %v35, 0
    %v152 = vsel %vm141, %v42, 0
    %v155 = vsel %vm141, %v49, 0
    %v158 = vsel %vm141, %v56, 0
    %v161 = vsel %vm141, %v63, 0
    %v164 = vsel %vm141, %v70, 0
    %v167 = vsel %vm141, %v77, 0
    %v170 = vsel %vm141, %v84, 0
    %v173 = vsel %vm141, %v91, 0
    %v176 = vsel %vm141, %v98, 0
    %v179 = vsel %vm141, %v105, 0
    %v182 = vsel %vm141, %v112, 0
    %v185 = vsel %vm141, %v119, 0
    %v188 = vsel %vm141, %v126, 0
    %v191 = vsel %vm141, %v133, 0
    %193 = vmatprep.subr.mxu0 %v23
    %194 = vmatpush1.xpose.msra.mxu0 %v22
    %195 = vmatprep.subr.mxu0 %v30
    %196 = vmatpush1.xpose.msra.mxu0 %v29
    %197 = vmatprep.subr.mxu0 %v37
    %198 = vmatpush1.xpose.msra.mxu0 %v36
    %199 = vmatprep.subr.mxu0 %v44
    %200 = vmatpush1.xpose.msra.mxu0 %v43
    %201 = vmatprep.subr.mxu0 %v51
    %202 = vmatpush1.xpose.msra.mxu0 %v50
    %203 = vmatprep.subr.mxu0 %v58
    %204 = vmatpush1.xpose.msra.mxu0 %v57
    %205 = vmatprep.subr.mxu0 %v65
    %206 = vmatpush1.xpose.msra.mxu0 %v64
    %207 = vmatprep.subr.mxu0 %v72
    %208 = vmatpush1.xpose.msra.mxu0 %v71
    %209 = vmatprep.subr.mxu0 %v79
    %210 = vmatpush1.xpose.msra.mxu0 %v78
    %211 = vmatprep.subr.mxu0 %v86
    %212 = vmatpush1.xpose.msra.mxu0 %v85
    %213 = vmatprep.subr.mxu0 %v93
    %214 = vmatpush1.xpose.msra.mxu0 %v92
    %215 = vmatprep.subr.mxu0 %v100
    %216 = vmatpush1.xpose.msra.mxu0 %v99
    %217 = vmatprep.subr.mxu0 %v107
    %218 = vmatpush1.xpose.msra.mxu0 %v106
    %219 = vmatprep.subr.mxu0 %v114
    %220 = vmatpush1.xpose.msra.mxu0 %v113
    %221 = vmatprep.subr.mxu0 %v121
    %222 = vmatpush1.xpose.msra.mxu0 %v120
    %223 = vmatprep.subr.mxu0 %v128
    %224 = vmatpush1.xpose.msra.mxu0 %v127
    %225 = vmatprep.subr.mxu0 0.0
    %226 = vmatpush1.xpose.msra.mxu0 0.0
    %227 = vmatprep.subr.mxu0 0.0
    %228 = vmatpush1.xpose.msra.mxu0 0.0
    %229 = vmatprep.subr.mxu0 0.0
    %230 = vmatpush1.xpose.msra.mxu0 0.0
    %231 = vmatprep.subr.mxu0 0.0
    %232 = vmatpush1.xpose.msra.mxu0 0.0
    %233 = vmatprep.subr.mxu0 0.0
    %234 = vmatpush1.xpose.msra.mxu0 0.0
    %235 = vmatprep.subr.mxu0 0.0
    %236 = vmatpush1.xpose.msra.mxu0 0.0
    %237 = vmatprep.subr.mxu0 0.0
    %238 = vmatpush1.xpose.msra.mxu0 0.0
    %239 = vmatprep.subr.mxu0 0.0
    %240 = vmatpush1.xpose.msra.mxu0 0.0
    %241 = vmatprep.subr.mxu0 0.0
    %242 = vmatpush1.xpose.msra.mxu0 0.0
    %243 = vmatprep.subr.mxu0 0.0
    %244 = vmatpush1.xpose.msra.mxu0 0.0
    %245 = vmatprep.subr.mxu0 0.0
    %246 = vmatpush1.xpose.msra.mxu0 0.0
    %247 = vmatprep.subr.mxu0 0.0
    %248 = vmatpush1.xpose.msra.mxu0 0.0
    %249 = vmatprep.subr.mxu0 0.0
    %250 = vmatpush1.xpose.msra.mxu0 0.0
    %251 = vmatprep.subr.mxu0 0.0
    %252 = vmatpush1.xpose.msra.mxu0 0.0
    %253 = vmatprep.subr.mxu0 0.0
    %254 = vmatpush1.xpose.msra.mxu0 0.0
    %255 = vmatprep.subr.mxu0 0.0
    %256 = vmatpush1.xpose.msra.mxu0 0.0
    %257 = vmatprep.mubr.f32.mxu0 %v16
    %258 = vmatmul.mubr.f32.gmra.mrb[0].mxu0 %v15
    %v259 = vpop.f32.mrb[0].mxu0
    %v260 = vadd.f32 %v139, %v259
    %v261 = vpop.f32.mrb[0].mxu0
    %262 = vdwg.mxu0
    %263 = vmatprep.subr.mxu0 %v25
    %264 = vmatpush1.xpose.msra.mxu0 %v24
    %265 = vmatprep.subr.mxu0 %v32
    %266 = vmatpush1.xpose.msra.mxu0 %v31
    %267 = vmatprep.subr.mxu0 %v39
    %268 = vmatpush1.xpose.msra.mxu0 %v38
    %269 = vmatprep.subr.mxu0 %v46
    %270 = vmatpush1.xpose.msra.mxu0 %v45
    %271 = vmatprep.subr.mxu0 %v53
    %272 = vmatpush1.xpose.msra.mxu0 %v52
    %273 = vmatprep.subr.mxu0 %v60
    %274 = vmatpush1.xpose.msra.mxu0 %v59
    %275 = vmatprep.subr.mxu0 %v67
    %276 = vmatpush1.xpose.msra.mxu0 %v66
    %277 = vmatprep.subr.mxu0 %v74
    %278 = vmatpush1.xpose.msra.mxu0 %v73
    %279 = vmatprep.subr.mxu0 %v81
    %280 = vmatpush1.xpose.msra.mxu0 %v80
    %281 = vmatprep.subr.mxu0 %v88
    %282 = vmatpush1.xpose.msra.mxu0 %v87
    %283 = vmatprep.subr.mxu0 %v95
    %284 = vmatpush1.xpose.msra.mxu0 %v94
    %285 = vmatprep.subr.mxu0 %v102
    %286 = vmatpush1.xpose.msra.mxu0 %v101
    %287 = vmatprep.subr.mxu0 %v109
    %288 = vmatpush1.xpose.msra.mxu0 %v108
    %289 = vmatprep.subr.mxu0 %v116
    %290 = vmatpush1.xpose.msra.mxu0 %v115
    %291 = vmatprep.subr.mxu0 %v123
    %292 = vmatpush1.xpose.msra.mxu0 %v122
    %293 = vmatprep.subr.mxu0 %v130
    %294 = vmatpush1.xpose.msra.mxu0 %v129
    %295 = vmatprep.subr.mxu0 0.0
    %296 = vmatpush1.xpose.msra.mxu0 0.0
    %297 = vmatprep.subr.mxu0 0.0
    %298 = vmatpush1.xpose.msra.mxu0 0.0
    %299 = vmatprep.subr.mxu0 0.0
    %300 = vmatpush1.xpose.msra.mxu0 0.0
    %301 = vmatprep.subr.mxu0 0.0
    %302 = vmatpush1.xpose.msra.mxu0 0.0
    %303 = vmatprep.subr.mxu0 0.0
    %304 = vmatpush1.xpose.msra.mxu0 0.0
    %305 = vmatprep.subr.mxu0 0.0
    %306 = vmatpush1.xpose.msra.mxu0 0.0
    %307 = vmatprep.subr.mxu0 0.0
    %308 = vmatpush1.xpose.msra.mxu0 0.0
    %309 = vmatprep.subr.mxu0 0.0
    %310 = vmatpush1.xpose.msra.mxu0 0.0
    %311 = vmatprep.subr.mxu0 0.0
    %312 = vmatpush1.xpose.msra.mxu0 0.0
    %313 = vmatprep.subr.mxu0 0.0
    %314 = vmatpush1.xpose.msra.mxu0 0.0
    %315 = vmatprep.subr.mxu0 0.0
    %316 = vmatpush1.xpose.msra.mxu0 0.0
    %317 = vmatprep.subr.mxu0 0.0
    %318 = vmatpush1.xpose.msra.mxu0 0.0
    %319 = vmatprep.subr.mxu0 0.0
    %320 = vmatpush1.xpose.msra.mxu0 0.0
    %321 = vmatprep.subr.mxu0 0.0
    %322 = vmatpush1.xpose.msra.mxu0 0.0
    %323 = vmatprep.subr.mxu0 0.0
    %324 = vmatpush1.xpose.msra.mxu0 0.0
    %325 = vmatprep.subr.mxu0 0.0
    %326 = vmatpush1.xpose.msra.mxu0 0.0
    %327 = vmatprep.mubr.f32.mxu0 %v18
    %328 = vmatmul.mubr.f32.gmra.mrb[0].mxu0 %v17
    %v329 = vpop.f32.mrb[0].mxu0
    %v330 = vadd.f32 %v260, %v329
    %v331 = vpop.f32.mrb[0].mxu0
    %332 = vdwg.mxu0
    %333 = vmatprep.subr.mxu0 %v27
    %334 = vmatpush1.xpose.msra.mxu0 %v26
    %335 = vmatprep.subr.mxu0 %v34
    %336 = vmatpush1.xpose.msra.mxu0 %v33
    %337 = vmatprep.subr.mxu0 %v41
    %338 = vmatpush1.xpose.msra.mxu0 %v40
    %339 = vmatprep.subr.mxu0 %v48
    %340 = vmatpush1.xpose.msra.mxu0 %v47
    %341 = vmatprep.subr.mxu0 %v55
    %342 = vmatpush1.xpose.msra.mxu0 %v54
    %343 = vmatprep.subr.mxu0 %v62
    %344 = vmatpush1.xpose.msra.mxu0 %v61
    %345 = vmatprep.subr.mxu0 %v69
    %346 = vmatpush1.xpose.msra.mxu0 %v68
    %347 = vmatprep.subr.mxu0 %v76
    %348 = vmatpush1.xpose.msra.mxu0 %v75
    %349 = vmatprep.subr.mxu0 %v83
    %350 = vmatpush1.xpose.msra.mxu0 %v82
    %351 = vmatprep.subr.mxu0 %v90
    %352 = vmatpush1.xpose.msra.mxu0 %v89
    %353 = vmatprep.subr.mxu0 %v97
    %354 = vmatpush1.xpose.msra.mxu0 %v96
    %355 = vmatprep.subr.mxu0 %v104
    %356 = vmatpush1.xpose.msra.mxu0 %v103
    %357 = vmatprep.subr.mxu0 %v111
    %358 = vmatpush1.xpose.msra.mxu0 %v110
    %359 = vmatprep.subr.mxu0 %v118
    %360 = vmatpush1.xpose.msra.mxu0 %v117
    %361 = vmatprep.subr.mxu0 %v125
    %362 = vmatpush1.xpose.msra.mxu0 %v124
    %363 = vmatprep.subr.mxu0 %v132
    %364 = vmatpush1.xpose.msra.mxu0 %v131
    %365 = vmatprep.subr.mxu0 0.0
    %366 = vmatpush1.xpose.msra.mxu0 0.0
    %367 = vmatprep.subr.mxu0 0.0
    %368 = vmatpush1.xpose.msra.mxu0 0.0
    %369 = vmatprep.subr.mxu0 0.0
    %370 = vmatpush1.xpose.msra.mxu0 0.0
    %371 = vmatprep.subr.mxu0 0.0
    %372 = vmatpush1.xpose.msra.mxu0 0.0
    %373 = vmatprep.subr.mxu0 0.0
    %374 = vmatpush1.xpose.msra.mxu0 0.0
    %375 = vmatprep.subr.mxu0 0.0
    %376 = vmatpush1.xpose.msra.mxu0 0.0
    %377 = vmatprep.subr.mxu0 0.0
    %378 = vmatpush1.xpose.msra.mxu0 0.0
    %379 = vmatprep.subr.mxu0 0.0
    %380 = vmatpush1.xpose.msra.mxu0 0.0
    %381 = vmatprep.subr.mxu0 0.0
    %382 = vmatpush1.xpose.msra.mxu0 0.0
    %383 = vmatprep.subr.mxu0 0.0
    %384 = vmatpush1.xpose.msra.mxu0 0.0
    %385 = vmatprep.subr.mxu0 0.0
    %386 = vmatpush1.xpose.msra.mxu0 0.0
    %387 = vmatprep.subr.mxu0 0.0
    %388 = vmatpush1.xpose.msra.mxu0 0.0
    %389 = vmatprep.subr.mxu0 0.0
    %390 = vmatpush1.xpose.msra.mxu0 0.0
    %391 = vmatprep.subr.mxu0 0.0
    %392 = vmatpush1.xpose.msra.mxu0 0.0
    %393 = vmatprep.subr.mxu0 0.0
    %394 = vmatpush1.xpose.msra.mxu0 0.0
    %395 = vmatprep.subr.mxu0 0.0
    %396 = vmatpush1.xpose.msra.mxu0 0.0
    %397 = vmatprep.mubr.f32.mxu0 %v20
    %398 = vmatmul.mubr.f32.gmra.mrb[0].mxu0 %v19
    %v399 = vpop.f32.mrb[0].mxu0
    %v400 = vadd.f32 %v330, %v399
    %v401 = vpop.f32.mrb[0].mxu0
    %402 = vdwg.mxu0
    %403 = vmatprep.subr.mxu0 0.0
    %404 = vmatpush1.xpose.msra.mxu0 %v146
    %405 = vmatprep.subr.mxu0 0.0
    %406 = vmatpush1.xpose.msra.mxu0 %v149
    %407 = vmatprep.subr.mxu0 0.0
    %408 = vmatpush1.xpose.msra.mxu0 %v152
    %409 = vmatprep.subr.mxu0 0.0
    %410 = vmatpush1.xpose.msra.mxu0 %v155
    %411 = vmatprep.subr.mxu0 0.0
    %412 = vmatpush1.xpose.msra.mxu0 %v158
    %413 = vmatprep.subr.mxu0 0.0
    %414 = vmatpush1.xpose.msra.mxu0 %v161
    %415 = vmatprep.subr.mxu0 0.0
    %416 = vmatpush1.xpose.msra.mxu0 %v164
    %417 = vmatprep.subr.mxu0 0.0
    %418 = vmatpush1.xpose.msra.mxu0 %v167
    %419 = vmatprep.subr.mxu0 0.0
    %420 = vmatpush1.xpose.msra.mxu0 %v170
    %421 = vmatprep.subr.mxu0 0.0
    %422 = vmatpush1.xpose.msra.mxu0 %v173
    %423 = vmatprep.subr.mxu0 0.0
    %424 = vmatpush1.xpose.msra.mxu0 %v176
    %425 = vmatprep.subr.mxu0 0.0
    %426 = vmatpush1.xpose.msra.mxu0 %v179
    %427 = vmatprep.subr.mxu0 0.0
    %428 = vmatpush1.xpose.msra.mxu0 %v182
    %429 = vmatprep.subr.mxu0 0.0
    %430 = vmatpush1.xpose.msra.mxu0 %v185
    %431 = vmatprep.subr.mxu0 0.0
    %432 = vmatpush1.xpose.msra.mxu0 %v188
    %433 = vmatprep.subr.mxu0 0.0
    %434 = vmatpush1.xpose.msra.mxu0 %v191
    %435 = vmatprep.subr.mxu0 0.0
    %436 = vmatpush1.xpose.msra.mxu0 0.0
    %437 = vmatprep.subr.mxu0 0.0
    %438 = vmatpush1.xpose.msra.mxu0 0.0
    %439 = vmatprep.subr.mxu0 0.0
    %440 = vmatpush1.xpose.msra.mxu0 0.0
    %441 = vmatprep.subr.mxu0 0.0
    %442 = vmatpush1.xpose.msra.mxu0 0.0
    %443 = vmatprep.subr.mxu0 0.0
    %444 = vmatpush1.xpose.msra.mxu0 0.0
    %445 = vmatprep.subr.mxu0 0.0
    %446 = vmatpush1.xpose.msra.mxu0 0.0
    %447 = vmatprep.subr.mxu0 0.0
    %448 = vmatpush1.xpose.msra.mxu0 0.0
    %449 = vmatprep.subr.mxu0 0.0
    %450 = vmatpush1.xpose.msra.mxu0 0.0
    %451 = vmatprep.subr.mxu0 0.0
    %452 = vmatpush1.xpose.msra.mxu0 0.0
    %453 = vmatprep.subr.mxu0 0.0
    %454 = vmatpush1.xpose.msra.mxu0 0.0
    %455 = vmatprep.subr.mxu0 0.0
    %456 = vmatpush1.xpose.msra.mxu0 0.0
    %457 = vmatprep.subr.mxu0 0.0
    %458 = vmatpush1.xpose.msra.mxu0 0.0
    %459 = vmatprep.subr.mxu0 0.0
    %460 = vmatpush1.xpose.msra.mxu0 0.0
    %461 = vmatprep.subr.mxu0 0.0
    %462 = vmatpush1.xpose.msra.mxu0 0.0
    %463 = vmatprep.subr.mxu0 0.0
    %464 = vmatpush1.xpose.msra.mxu0 0.0
    %465 = vmatprep.subr.mxu0 0.0
    %466 = vmatpush1.xpose.msra.mxu0 0.0
    %467 = vmatprep.mubr.f32.mxu0 0.0
    %468 = vmatmul.mubr.f32.gmra.mrb[0].mxu0 %v143
    %v469 = vpop.f32.mrb[0].mxu0
    %v470 = vadd.f32 %v400, %v469
    %v471 = vpop.f32.mrb[0].mxu0
    %472 = vdwg.mxu0
    %473 = vst [vmem:[#allocation2] sm:$0xff] %v470
    // Predicated region
    $region14: #{tpu_custom_call.1} parent=1 // pred_check
      _
    $region15: #{tpu_custom_call.1} parent=1 // pred_check_branch
      %475 = sbr.rel (0) target = $region17
    $region16: #{tpu_custom_call.1} parent=1 // pred_region
      %s477 = ssub.s32 128, 128
      %478 = vsyncadd [#allocation3], %s477
      %s480 = sshll.u32 [#allocation2], 4
      %s481 = int_to_ptr.vmem [resolvable:$true] %s480
      %483 = dma.vmem_to_hbm [thread:$0]  %s481, 128, %s3, [#allocation3]
    $region17: #{tpu_custom_call.1} parent=1 // pred_fallthru
      _
    // Predicated region
    $region18: #{tpu_custom_call.1} parent=1 // pred_check
      _
    $region19: #{tpu_custom_call.1} parent=1 // pred_check_branch
      %485 = sbr.rel (0) target = $region21
    $region20: #{tpu_custom_call.1} parent=1 // pred_region
      %486 = dma.done [#allocation3], 128
    $region21: #{tpu_custom_call.1} parent=1 // pred_fallthru
      _
    %487 = vsyncpa [#allocation3], 1

</llo_original>
